<compile_context>
chip_gen: v5e
topology: v5e:2x2
jax: 0.10.0
libtpu: 0.0.40
codegen_flags: <defaults>
</compile_context>

<pallas_src>
import functools

import jax
import jax.numpy as jnp
from jax import lax
from jax.experimental import pallas as pl
from jax.experimental.pallas import tpu as pltpu


def full_attention_kernel(qp_ref, kp_ref, vp_ref, wf_ref, bf_ref,
                          out_ref, attn_ref, acc_ref, *, num_heads):
    """One grid step = (batch b, query tile qi, head h).

    qp_ref  : (1, 1, TQ, dh)  bf16  projected + scaled Q for this (b, h, qi)
    kp_ref  : (1, H, S, dh)   bf16  projected K, whole batch element (VMEM-resident)
    vp_ref  : (1, H, S, dh)   bf16  projected V, whole batch element (VMEM-resident)
    wf_ref  : (H, dh, D)      bf16  per-head slices of W_fc^T
    bf_ref  : (1, D)          f32   fc bias
    out_ref : (1, TQ, D)      f32   output tile (resident across the head axis)
    attn_ref: (1, 1, TQ, S)         attention weights for (b, h, qi)
    acc_ref : (TQ, D)         f32   fc accumulator across heads
    """
    h = pl.program_id(2)

    qh = qp_ref[0, 0]          # (TQ, dh)
    kh = kp_ref[0, h]          # (S, dh)  leading-axis slice: cheap address offset
    vh = vp_ref[0, h]          # (S, dh)

    # Scores: contract dh of both operands -> (TQ, S); S stays on the lane axis and
    # kh is never transposed.  The 1/sqrt(dh) scale is folded into the Q projection.
    scores = lax.dot_general(qh, kh, (((1,), (1,)), ((), ())),
                             preferred_element_type=jnp.float32)

    m = jnp.max(scores, axis=-1, keepdims=True)
    p = jnp.exp(scores - m)
    denom = jnp.sum(p, axis=-1, keepdims=True)
    # Exact reciprocal (not approx): the weights are returned to the caller and must
    # sum to 1 along the last axis.
    weights = p * pl.reciprocal(denom, approx=False)
    attn_ref[0, 0] = weights.astype(attn_ref.dtype)

    # Context for this head, then its contribution to the fused output projection.
    ctx = jnp.dot(weights.astype(jnp.bfloat16), vh,
                  preferred_element_type=jnp.float32)                 # (TQ, dh)
    partial = jnp.dot(ctx.astype(jnp.bfloat16), wf_ref[h],
                      preferred_element_type=jnp.float32)             # (TQ, D)

    @pl.when(h == 0)
    def _():
        acc_ref[...] = jnp.zeros_like(acc_ref)

    acc_ref[...] += partial

    @pl.when(h == num_heads - 1)
    def _():
        out_ref[0] = (acc_ref[...] + bf_ref[...]).astype(out_ref.dtype)


def _vmem_limit_bytes(default=48 * 1024 * 1024):
    """~85% of physical VMEM: ~108 MiB on v5e/v6e (128 MiB), ~54 MiB on v7x (64 MiB)."""
    try:
        return int(pltpu.get_tpu_info().vmem_capacity_bytes * 0.85)
    except Exception:
        return default


def full_attention(q, k, v, params, num_heads, *, q_tile=256,
                   attn_dtype=jnp.bfloat16):
    """q, k, v: (B, S, d_model) f32.  Returns (output (B,S,D) f32, attn (B,H,S,S))."""
    B, S, D = q.shape
    assert D % num_heads == 0
    depth = D // num_heads
    wq, bq, wk, bk, wv, bv, wf, bf = params

    # q_tile=256 matches the 256-wide MXU (v6e/v7x); use 128 on v5e (128-wide MXU,
    # single vst slot, lowest HBM bandwidth).
    tq = min(q_tile, S)
    assert S % tq == 0, "sequence length must be divisible by the query tile"
    n_q = S // tq

    # --- Host-side prep (plain XLA): Q/K/V projections hoisted out of the kernel.
    # Removes the per-batch qi==0 compute bubble and the raw-K/V VMEM residency, and
    # lets both b and qi grid axes be parallel.  Scale folded into the Q projection;
    # outputs are head-major (B, H, S, depth) bf16 so per-head tiles are contiguous.
    scale = 1.0 / jnp.sqrt(jnp.float32(depth))

    def project_heads(x, w, b):
        y = jnp.einsum('bsd,ed->bse', x.astype(jnp.bfloat16), w.astype(jnp.bfloat16),
                       preferred_element_type=jnp.float32) + b.astype(jnp.float32)
        return y.reshape(B, S, num_heads, depth).transpose(0, 2, 1, 3).astype(jnp.bfloat16)

    qp = project_heads(q, wq * scale, bq * scale)
    kp = project_heads(k, wk, bk)
    vp = project_heads(v, wv, bv)

    # fc weight as per-head (depth, D) slices of W_fc^T (contiguous per head); f32 bias.
    wf_heads = wf.T.reshape(num_heads, depth, D).astype(jnp.bfloat16)
    bf_f32 = bf.astype(jnp.float32)

    q_spec = pl.BlockSpec((1, 1, tq, depth), lambda b, qi, h: (b, h, qi, 0))
    # Projected K/V: resident for a whole batch element (index depends only on b).
    kv_spec = pl.BlockSpec((1, num_heads, S, depth), lambda b, qi, h: (b, 0, 0, 0))
    wf_spec = pl.BlockSpec((num_heads, depth, D), lambda b, qi, h: (0, 0, 0))
    bf_spec = pl.BlockSpec((1, D), lambda b, qi, h: (0, 0))

    out_spec = pl.BlockSpec((1, tq, D), lambda b, qi, h: (b, qi, 0))
    attn_spec = pl.BlockSpec((1, 1, tq, S), lambda b, qi, h: (b, h, qi, 0))

    kernel = functools.partial(full_attention_kernel, num_heads=num_heads)

    # Advisory cost estimate so XLA schedules around the custom call sensibly.
    flops = B * (4 * S * S * D + 2 * S * D * D)
    attn_bytes = B * num_heads * S * S * jnp.dtype(attn_dtype).itemsize
    bytes_accessed = (3 * B * S * D * 2        # qp, kp, vp (bf16)
                      + 2 * D * D + 4 * D      # fc weight (bf16) + bias (f32)
                      + B * S * D * 4          # output (f32)
                      + attn_bytes)            # attention weights
    cost = pl.CostEstimate(flops=flops,
                           transcendentals=B * num_heads * S * S,
                           bytes_accessed=bytes_accessed)

    out, attn = pl.pallas_call(
        kernel,
        out_shape=(
            jax.ShapeDtypeStruct((B, S, D), jnp.float32),
            # The PyTorch module returns attention weights; bf16 by default per the
            # perf review (halves the dominant HBM store). Pass attn_dtype=jnp.float32
            # for an exact-dtype match.
            jax.ShapeDtypeStruct((B, num_heads, S, S), attn_dtype),
        ),
        grid_spec=pltpu.PrefetchScalarGridSpec(
            num_scalar_prefetch=0,
            grid=(B, n_q, num_heads),
            in_specs=[q_spec, kv_spec, kv_spec, wf_spec, bf_spec],
            out_specs=[out_spec, attn_spec],
            scratch_shapes=[pltpu.VMEM((tq, D), jnp.float32)],  # fc accumulator
        ),
        compiler_params=pltpu.CompilerParams(
            dimension_semantics=("parallel", "parallel", "arbitrary"),
            vmem_limit_bytes=_vmem_limit_bytes()),
        cost_estimate=cost,
    )(qp, kp, vp, wf_heads, bf_f32)
    return out, attn


def init_params(key, d_model):
    """Deterministic synthetic parameters (PyTorch Linear layout: (out, in))."""
    ks = jax.random.split(key, 8)
    scale = 1.0 / jnp.sqrt(jnp.float32(d_model))
    wq = jax.random.uniform(ks[0], (d_model, d_model), jnp.float32, -scale, scale)
    bq = jax.random.uniform(ks[1], (1, d_model), jnp.float32, -scale, scale)
    wk = jax.random.uniform(ks[2], (d_model, d_model), jnp.float32, -scale, scale)
    bk = jax.random.uniform(ks[3], (1, d_model), jnp.float32, -scale, scale)
    wv = jax.random.uniform(ks[4], (d_model, d_model), jnp.float32, -scale, scale)
    bv = jax.random.uniform(ks[5], (1, d_model), jnp.float32, -scale, scale)
    wf = jax.random.uniform(ks[6], (d_model, d_model), jnp.float32, -scale, scale)
    bf = jax.random.uniform(ks[7], (1, d_model), jnp.float32, -scale, scale)
    return (wq, bq, wk, bk, wv, bv, wf, bf)


def reference(q, k, v, params, num_heads):
    """Pure-JAX f32 reference mirroring the PyTorch forward."""
    B, S, D = q.shape
    dh = D // num_heads
    wq, bq, wk, bk, wv, bv, wf, bf = params

    def proj(x, w, b):
        return (x @ w.T + b[0]).reshape(B, S, num_heads, dh).transpose(0, 2, 1, 3)

    qh, kh, vh = proj(q, wq, bq), proj(k, wk, bk), proj(v, wv, bv)
    scores = jnp.einsum('bhqd,bhkd->bhqk', qh, kh) / jnp.sqrt(jnp.float32(dh))
    w = jax.nn.softmax(scores, axis=-1)
    out = jnp.einsum('bhqk,bhkd->bhqd', w, vh).transpose(0, 2, 1, 3).reshape(B, S, D)
    return out @ wf.T + bf[0], w


if __name__ == "__main__":
    B, S, d_model, num_heads = 2, 8, 32, 4

    key = jax.random.PRNGKey(0)
    kq, kk, kv, kparam = jax.random.split(key, 4)
    q = jax.random.normal(kq, (B, S, d_model), jnp.float32)
    k = jax.random.normal(kk, (B, S, d_model), jnp.float32)
    v = jax.random.normal(kv, (B, S, d_model), jnp.float32)
    params = init_params(kparam, d_model)

    out, attn = full_attention(q, k, v, params, num_heads)
    out = jax.block_until_ready(out)
    attn = jax.block_until_ready(attn)

    ref_out, ref_attn = reference(q, k, v, params, num_heads)
    assert out.shape == (B, S, d_model)
    assert attn.shape == (B, num_heads, S, S)
    # Tolerances account for bf16 MXU operands (f32 accumulation) and bf16 attn output.
    assert jnp.allclose(out, ref_out, atol=5e-2, rtol=5e-2)
    assert jnp.allclose(attn.astype(jnp.float32), ref_attn, atol=2e-2, rtol=2e-2)

    print("KERNEL_OK")
</pallas_src>

<mosaic_0001>
module attributes {stable_mosaic.version = 11 : i64} {
  func.func @full_attention_kernel(%arg0: i32, %arg1: i32, %arg2: i32, %arg3: memref<1x1x8x8xbf16, #tpu.memory_space<vmem>>, %arg4: memref<1x4x8x8xbf16, #tpu.memory_space<vmem>>, %arg5: memref<1x4x8x8xbf16, #tpu.memory_space<vmem>>, %arg6: memref<4x8x32xbf16, #tpu.memory_space<vmem>>, %arg7: memref<1x32xf32, #tpu.memory_space<vmem>>, %arg8: memref<1x8x32xf32, #tpu.memory_space<vmem>>, %arg9: memref<1x1x8x8xbf16, #tpu.memory_space<vmem>>, %arg10: memref<8x32xf32, #tpu.memory_space<vmem>>) attributes {dimension_semantics = [#tpu.dimension_semantics<parallel>, #tpu.dimension_semantics<parallel>, #tpu.dimension_semantics<arbitrary>], iteration_bounds = array<i64: 2, 1, 4>, scalar_prefetch = 0 : i64, scratch_operands = 1 : i64, tpu.core_type = #tpu.core_type<tc>, window_params = [{transform_indices = @transform_0, window_bounds = array<i64: 1, 1, 8, 8>}, {transform_indices = @transform_1, window_bounds = array<i64: 1, 4, 8, 8>}, {transform_indices = @transform_2, window_bounds = array<i64: 1, 4, 8, 8>}, {pipeline_mode = #tpu.pipeline_mode<synchronous>, transform_indices = @transform_3, window_bounds = array<i64: 4, 8, 32>}, {pipeline_mode = #tpu.pipeline_mode<synchronous>, transform_indices = @transform_4, window_bounds = array<i64: 1, 32>}, {transform_indices = @transform_5, window_bounds = array<i64: 1, 8, 32>}, {transform_indices = @transform_6, window_bounds = array<i64: 1, 1, 8, 8>}]} {
    %c0 = arith.constant 0 : index
    %c0_0 = arith.constant 0 : index
    %c0_1 = arith.constant 0 : index
    %c0_2 = arith.constant 0 : index
    %0 = vector.load %arg3[%c0, %c0_0, %c0_1, %c0_2] : memref<1x1x8x8xbf16, #tpu.memory_space<vmem>>, vector<1x1x8x8xbf16>
    %1 = vector.shape_cast %0 : vector<1x1x8x8xbf16> to vector<8x8xbf16>
    %c0_3 = arith.constant 0 : index
    %2 = arith.index_cast %arg2 : i32 to index
    %c0_4 = arith.constant 0 : index
    %c0_5 = arith.constant 0 : index
    %3 = vector.load %arg4[%c0_3, %2, %c0_4, %c0_5] : memref<1x4x8x8xbf16, #tpu.memory_space<vmem>>, vector<1x1x8x8xbf16>
    %4 = vector.shape_cast %3 : vector<1x1x8x8xbf16> to vector<8x8xbf16>
    %c0_6 = arith.constant 0 : index
    %5 = arith.index_cast %arg2 : i32 to index
    %c0_7 = arith.constant 0 : index
    %c0_8 = arith.constant 0 : index
    %6 = vector.load %arg5[%c0_6, %5, %c0_7, %c0_8] : memref<1x4x8x8xbf16, #tpu.memory_space<vmem>>, vector<1x1x8x8xbf16>
    %7 = vector.shape_cast %6 : vector<1x1x8x8xbf16> to vector<8x8xbf16>
    %cst = arith.constant dense<0.000000e+00> : vector<8x8xf32>
    %8 = tpu.matmul %1, %4, %cst {dimension_numbers = #tpu.dot_dimension_numbers<[1], [1], [0], [0], [0, 0, 1, 0], [], []>} : vector<8x8xbf16>, vector<8x8xbf16>, vector<8x8xf32> -> vector<8x8xf32>
    %cst_9 = arith.constant dense<0xFF800000> : vector<8xf32>
    %9 = vector.multi_reduction <maximumf>, %8, %cst_9 [1] : vector<8x8xf32> to vector<8xf32>
    %10 = vector.shape_cast %9 : vector<8xf32> to vector<8x1xf32>
    %11 = vector.broadcast %10 : vector<8x1xf32> to vector<8x8xf32>
    %12 = arith.subf %8, %11 : vector<8x8xf32>
    %13 = math.exp %12 : vector<8x8xf32>
    %cst_10 = arith.constant dense<0.000000e+00> : vector<8xf32>
    %14 = vector.multi_reduction <add>, %13, %cst_10 [1] : vector<8x8xf32> to vector<8xf32>
    %15 = vector.shape_cast %14 : vector<8xf32> to vector<8x1xf32>
    %16 = tpu.reciprocal %15 : vector<8x1xf32> -> vector<8x1xf32>
    %17 = vector.broadcast %16 : vector<8x1xf32> to vector<8x8xf32>
    %18 = arith.mulf %13, %17 : vector<8x8xf32>
    %19 = arith.truncf %18 : vector<8x8xf32> to vector<8x8xbf16>
    %c0_11 = arith.constant 0 : index
    %c0_12 = arith.constant 0 : index
    %c0_13 = arith.constant 0 : index
    %c0_14 = arith.constant 0 : index
    %20 = vector.load %arg9[%c0_11, %c0_12, %c0_13, %c0_14] : memref<1x1x8x8xbf16, #tpu.memory_space<vmem>>, vector<1x1x8x8xbf16>
    %21 = vector.shape_cast %20 : vector<1x1x8x8xbf16> to vector<8x8xbf16>
    %22 = vector.shape_cast %19 : vector<8x8xbf16> to vector<1x1x8x8xbf16>
    tpu.vector_store %arg9[%c0_11, %c0_12, %c0_13, %c0_14], %22 {strides = array<i32>} : memref<1x1x8x8xbf16, #tpu.memory_space<vmem>>, vector<1x1x8x8xbf16>,
    %23 = arith.truncf %18 : vector<8x8xf32> to vector<8x8xbf16>
    %cst_15 = arith.constant dense<0.000000e+00> : vector<8x8xf32>
    %24 = tpu.matmul %23, %7, %cst_15 {dimension_numbers = #tpu.dot_dimension_numbers<[1], [0], [0], [1], [0, 0, 1, 1], [], []>} : vector<8x8xbf16>, vector<8x8xbf16>, vector<8x8xf32> -> vector<8x8xf32>
    %25 = arith.truncf %24 : vector<8x8xf32> to vector<8x8xbf16>
    %26 = arith.index_cast %arg2 : i32 to index
    %c0_16 = arith.constant 0 : index
    %c0_17 = arith.constant 0 : index
    %27 = vector.load %arg6[%26, %c0_16, %c0_17] : memref<4x8x32xbf16, #tpu.memory_space<vmem>>, vector<1x8x32xbf16>
    %28 = vector.shape_cast %27 : vector<1x8x32xbf16> to vector<8x32xbf16>
    %cst_18 = arith.constant dense<0.000000e+00> : vector<8x32xf32>
    %29 = tpu.matmul %25, %28, %cst_18 {dimension_numbers = #tpu.dot_dimension_numbers<[1], [0], [0], [1], [0, 0, 1, 1], [], []>} : vector<8x8xbf16>, vector<8x32xbf16>, vector<8x32xf32> -> vector<8x32xf32>
    %c0_i32 = arith.constant 0 : i32
    %30 = arith.cmpi eq, %arg2, %c0_i32 : i32
    %31 = arith.extui %30 : i1 to i32
    %c0_i32_19 = arith.constant 0 : i32
    %32 = arith.cmpi ne, %31, %c0_i32_19 : i32
    scf.if %32 {
      %cst_25 = arith.constant 0.000000e+00 : f32
      %39 = vector.broadcast %cst_25 : f32 to vector<8x32xf32>
      %c0_26 = arith.constant 0 : index
      %c0_27 = arith.constant 0 : index
      %40 = vector.load %arg10[%c0_26, %c0_27] : memref<8x32xf32, #tpu.memory_space<vmem>>, vector<8x32xf32>
      tpu.vector_store %arg10[%c0_26, %c0_27], %39 {strides = array<i32>} : memref<8x32xf32, #tpu.memory_space<vmem>>, vector<8x32xf32>,
    } else {
    }
    %c0_20 = arith.constant 0 : index
    %c0_21 = arith.constant 0 : index
    %33 = vector.load %arg10[%c0_20, %c0_21] : memref<8x32xf32, #tpu.memory_space<vmem>>, vector<8x32xf32>
    %34 = arith.addf %33, %29 : vector<8x32xf32>
    %c0_22 = arith.constant 0 : index
    %c0_23 = arith.constant 0 : index
    %35 = vector.load %arg10[%c0_22, %c0_23] : memref<8x32xf32, #tpu.memory_space<vmem>>, vector<8x32xf32>
    tpu.vector_store %arg10[%c0_22, %c0_23], %34 {strides = array<i32>} : memref<8x32xf32, #tpu.memory_space<vmem>>, vector<8x32xf32>,
    %c3_i32 = arith.constant 3 : i32
    %36 = arith.cmpi eq, %arg2, %c3_i32 : i32
    %37 = arith.extui %36 : i1 to i32
    %c0_i32_24 = arith.constant 0 : i32
    %38 = arith.cmpi ne, %37, %c0_i32_24 : i32
    scf.if %38 {
      %c0_25 = arith.constant 0 : index
      %c0_26 = arith.constant 0 : index
      %39 = vector.load %arg10[%c0_25, %c0_26] : memref<8x32xf32, #tpu.memory_space<vmem>>, vector<8x32xf32>
      %c0_27 = arith.constant 0 : index
      %c0_28 = arith.constant 0 : index
      %40 = vector.load %arg7[%c0_27, %c0_28] : memref<1x32xf32, #tpu.memory_space<vmem>>, vector<1x32xf32>
      %41 = vector.broadcast %40 : vector<1x32xf32> to vector<8x32xf32>
      %42 = arith.addf %39, %41 : vector<8x32xf32>
      %c0_29 = arith.constant 0 : index
      %c0_30 = arith.constant 0 : index
      %c0_31 = arith.constant 0 : index
      %43 = vector.load %arg8[%c0_29, %c0_30, %c0_31] : memref<1x8x32xf32, #tpu.memory_space<vmem>>, vector<1x8x32xf32>
      %44 = vector.shape_cast %43 : vector<1x8x32xf32> to vector<8x32xf32>
      %45 = vector.shape_cast %42 : vector<8x32xf32> to vector<1x8x32xf32>
      tpu.vector_store %arg8[%c0_29, %c0_30, %c0_31], %45 {strides = array<i32>} : memref<1x8x32xf32, #tpu.memory_space<vmem>>, vector<1x8x32xf32>,
    } else {
    }
    return
  }
  func.func @transform_0(%arg0: i32, %arg1: i32, %arg2: i32) -> (i32, i32, i32, i32) {
    %c0_i32 = arith.constant 0 : i32
    %c0_i32_0 = arith.constant 0 : i32
    return %arg0, %arg2, %arg1, %c0_i32 : i32, i32, i32, i32
  }
  func.func @transform_1(%arg0: i32, %arg1: i32, %arg2: i32) -> (i32, i32, i32, i32) {
    %c0_i32 = arith.constant 0 : i32
    %c0_i32_0 = arith.constant 0 : i32
    %c0_i32_1 = arith.constant 0 : i32
    %c0_i32_2 = arith.constant 0 : i32
    return %arg0, %c0_i32, %c0_i32_0, %c0_i32_1 : i32, i32, i32, i32
  }
  func.func @transform_2(%arg0: i32, %arg1: i32, %arg2: i32) -> (i32, i32, i32, i32) {
    %c0_i32 = arith.constant 0 : i32
    %c0_i32_0 = arith.constant 0 : i32
    %c0_i32_1 = arith.constant 0 : i32
    %c0_i32_2 = arith.constant 0 : i32
    return %arg0, %c0_i32, %c0_i32_0, %c0_i32_1 : i32, i32, i32, i32
  }
  func.func @transform_3(%arg0: i32, %arg1: i32, %arg2: i32) -> (i32, i32, i32) {
    %c0_i32 = arith.constant 0 : i32
    %c0_i32_0 = arith.constant 0 : i32
    %c0_i32_1 = arith.constant 0 : i32
    %c0_i32_2 = arith.constant 0 : i32
    return %c0_i32, %c0_i32_0, %c0_i32_1 : i32, i32, i32
  }
  func.func @transform_4(%arg0: i32, %arg1: i32, %arg2: i32) -> (i32, i32) {
    %c0_i32 = arith.constant 0 : i32
    %c0_i32_0 = arith.constant 0 : i32
    %c0_i32_1 = arith.constant 0 : i32
    return %c0_i32, %c0_i32_0 : i32, i32
  }
  func.func @transform_5(%arg0: i32, %arg1: i32, %arg2: i32) -> (i32, i32, i32) {
    %c0_i32 = arith.constant 0 : i32
    %c0_i32_0 = arith.constant 0 : i32
    return %arg0, %arg1, %c0_i32 : i32, i32, i32
  }
  func.func @transform_6(%arg0: i32, %arg1: i32, %arg2: i32) -> (i32, i32, i32, i32) {
    %c0_i32 = arith.constant 0 : i32
    %c0_i32_0 = arith.constant 0 : i32
    return %arg0, %arg2, %arg1, %c0_i32 : i32, i32, i32, i32
  }
}

</mosaic_0001>

<llo_original>
// kernel: tpu_custom_call.1
$region0: #{tpu_custom_call.1}
  #allocation0 [shape = 'u32[]', space=smem, size = 0x4, offset = 0x4, fixed_abs, tag = 'smem constant byte address 0x4 - core index']
  #allocation1 [shape = 'u32[72,128]{1,0:T(1,128)}', space=vmem, size = 0x9000, scoped, tag = 'internal scratch']
  #allocation2 [shape = 'f32[8,32]{1,0:T(8,128)}', space=vmem, size = 0x1000, scoped, tag = 'scratch operand']
  %s0 = inlined_call_operand.hbm [shape: bf16[2,4,8,8], index: 0, kind: input, shape index: {}]
  %s1 = inlined_call_operand.hbm [shape: bf16[2,4,8,8], index: 1, kind: input, shape index: {}]
  %s2 = inlined_call_operand.hbm [shape: bf16[2,4,8,8], index: 2, kind: input, shape index: {}]
  %s3 = inlined_call_operand.hbm [shape: bf16[4,8,32], index: 3, kind: input, shape index: {}]
  %s4 = inlined_call_operand.vmem [shape: f32[1,32], index: 4, kind: input, shape index: {}]
  %s5 = inlined_call_operand.hbm [shape: f32[2,8,32], index: 5, kind: output, shape index: {0}]
  %s6 = inlined_call_operand.hbm [shape: bf16[2,4,8,8], index: 6, kind: output, shape index: {1}]
  %7 = xla_tuple %s5, %s6
  %s8 = sld [smem:[#allocation0]]
  $region85: #{tpu_custom_call.1} parent=0
    _
  %s10 = ssub.s32 1, %s8
  %s11 = scalar_select 0, %s10, %s8
  $region1: #{tpu_custom_call.1} parent=0
    #allocation3 [shape = 'u8[4096]{0}', space=vmem, size = 0x1000, scoped, tag = 'input window, operand 0']
    #allocation4 [shape = 's32[2]{0}', space=sflag, size = 0x8, scoped, tag = 'scoped memory for tpu_custom_call.1']
    #allocation5 [shape = 's32[2]{0}', space=sflag, size = 0x8, scoped, tag = 'scoped memory for tpu_custom_call.1']
    #allocation6 [shape = 'u8[16384]{0}', space=vmem, size = 0x4000, scoped, tag = 'input window, operand 1']
    #allocation7 [shape = 's32[2]{0}', space=sflag, size = 0x8, scoped, tag = 'scoped memory for tpu_custom_call.1']
    #allocation8 [shape = 'u8[16384]{0}', space=vmem, size = 0x4000, scoped, tag = 'input window, operand 2']
    #allocation9 [shape = 'u8[8192]{0}', space=vmem, size = 0x2000, scoped, tag = 'input window, operand 3, single buffered']
    #allocation10 [shape = 's32[1]{0}', space=sflag, size = 0x4, scoped, tag = 'scoped memory for tpu_custom_call.1']
    #allocation11 [shape = 'u8[8192]{0}', space=vmem, size = 0x2000, scoped, tag = 'output window, operand 0']
    #allocation12 [shape = 'u8[4096]{0}', space=vmem, size = 0x1000, scoped, tag = 'output window, operand 1']
    #allocation13 [shape = 's32[2]{0}', space=sflag, size = 0x8, scoped, tag = 'scoped memory for tpu_custom_call.1']
    %12 = vsyncpa [#allocation4], 0
    %s13 = scalar_lea.sflag [#allocation4], 1
    %14 = vsyncpa %s13, 0
    %15 = vsyncpa [#allocation7], 0
    %s16 = scalar_lea.sflag [#allocation7], 1
    %17 = vsyncpa %s16, 0
    %18 = vsyncpa [#allocation10], 0
    %19 = vsyncpa [#allocation5], 0
    %s20 = scalar_lea.sflag [#allocation5], 1
    %21 = vsyncpa %s20, 0
    %22 = vsyncpa [#allocation13], 0
    %s23 = scalar_lea.sflag [#allocation13], 1
    %24 = vsyncpa %s23, 0
    loop: start=0, step=1, limit=10
    $region2: #{tpu_custom_call.1} parent=1 // loop_pre_header
      _
    $region3: #{tpu_custom_call.1} parent=1 // loop_header
      %s26 = sphi 0, %s30
      %p27 = scmp.ge.s32.totalorder %s26, 10
      %s33 = sphi 0, %s52
      %s34 = sphi 0, %s48
      %s35 = sphi 0, %s44
      %s36 = sphi 0, %s33
      %s37 = sphi 0, %s34
      %s38 = sphi 0, %s35
      %s39 = sphi 0, %s36
      %s40 = sphi 0, %s37
      %s41 = sphi 0, %s38
      %s59 = sphi 0, %s61
      %s62 = sphi 0, %s59
      %s63 = sphi 0, %s62
      %s79 = sphi 0, %s63
      %s85 = sphi 0, %s87
      %s88 = sphi 0, %s85
      %s89 = sphi 0, %s88
      %s105 = sphi 0, %s89
      %s111 = sphi 0, %s113
      %s114 = sphi 0, %s111
      %s115 = sphi 0, %s114
      %s131 = sphi 0, %s115
      %s135 = sphi 0, %s135
      %s137 = sphi 0, %s135
      %s138 = sphi 0, %s137
      %s152 = sphi 0, %s138
      %s156 = sphi 0, %s156
      %s158 = sphi 0, %s156
      %s159 = sphi 0, %s158
      %s173 = sphi 0, %s159
      %s181 = sphi 0, %s183
      %s184 = sphi 0, %s181
      %s185 = sphi 0, %s184
      %s201 = sphi 0, %s185
      %s211 = sphi 0, %s213
      %s214 = sphi 0, %s211
      %s215 = sphi 0, %s214
      %s231 = sphi 0, %s215
    $region4: #{tpu_custom_call.1} parent=1 // loop_header_branch
      %29 = sbr.rel (%p27) target = $region8
    $region5: #{tpu_custom_call.1} parent=1 // loop_body
      %s31 = ssub.s32 %s26, 1
      %s32 = ssub.s32 %s26, 2
      %s42 = sadd.s32 1, %s35
      %p43 = scmp.ge.s32.totalorder %s42, 4
      %s44 = scalar_select %p43, 0, %s42
      %s45 = sadd.s32 1, %s34
      %s46 = scalar_select %p43, %s45, %s34
      %p47 = scmp.ge.s32.totalorder %s46, 1
      %s48 = scalar_select %p47, 0, %s46
      %s49 = sadd.s32 1, %s33
      %s50 = scalar_select %p47, %s49, %s33
      %p51 = scmp.ge.s32.totalorder %s50, 2
      %s52 = scalar_select %p51, 0, %s50
      %s53 = ssub.s32 %s33, %s52
      %s54 = ssub.s32 %s35, %s44
      %s55 = sor.u32 %s53, %s54
      %s56 = ssub.s32 %s34, %s48
      %s57 = sor.u32 %s55, %s56
      %p58 = scmp.eq.s32.totalorder %s57, 0
      %s60 = sadd.s32 %s59, 1
      %s61 = scalar_select %p58, %s59, %s60
      %p64 = pneg %p58
      %p65 = scmp.eq.s32.totalorder %s26, 7
      %p66 = por %p64, %p65
      %p67 = scmp.ne.s32.totalorder %s59, %s62
      %p68 = scmp.eq.s32.totalorder %s26, 0
      %p69 = por %p67, %p68
      %p70 = scmp.ne.s32.totalorder %s59, %s62
      %p71 = scmp.eq.s32.totalorder %s31, 7
      %p72 = por %p70, %p71
      %p73 = scmp.ne.s32.totalorder %s62, %s63
      %p74 = scmp.eq.s32.totalorder %s31, 0
      %p75 = por %p73, %p74
      %p76 = scmp.ne.s32.totalorder %s62, %s63
      %p77 = scmp.eq.s32.totalorder %s32, 7
      %p78 = por %p76, %p77
      %p80 = scmp.ne.s32.totalorder %s63, %s79
      %p81 = scmp.eq.s32.totalorder %s32, 0
      %p82 = por %p80, %p81
      %s83 = ssub.s32 %s33, %s52
      %p84 = scmp.eq.s32.totalorder %s83, 0
      %s86 = sadd.s32 %s85, 1
      %s87 = scalar_select %p84, %s85, %s86
      %p90 = pneg %p84
      %p91 = scmp.eq.s32.totalorder %s26, 7
      %p92 = por %p90, %p91
      %p93 = scmp.ne.s32.totalorder %s85, %s88
      %p94 = scmp.eq.s32.totalorder %s26, 0
      %p95 = por %p93, %p94
      %p96 = scmp.ne.s32.totalorder %s85, %s88
      %p97 = scmp.eq.s32.totalorder %s31, 7
      %p98 = por %p96, %p97
      %p99 = scmp.ne.s32.totalorder %s88, %s89
      %p100 = scmp.eq.s32.totalorder %s31, 0
      %p101 = por %p99, %p100
      %p102 = scmp.ne.s32.totalorder %s88, %s89
      %p103 = scmp.eq.s32.totalorder %s32, 7
      %p104 = por %p102, %p103
      %p106 = scmp.ne.s32.totalorder %s89, %s105
      %p107 = scmp.eq.s32.totalorder %s32, 0
      %p108 = por %p106, %p107
      %s109 = ssub.s32 %s33, %s52
      %p110 = scmp.eq.s32.totalorder %s109, 0
      %s112 = sadd.s32 %s111, 1
      %s113 = scalar_select %p110, %s111, %s112
      %p116 = pneg %p110
      %p117 = scmp.eq.s32.totalorder %s26, 7
      %p118 = por %p116, %p117
      %p119 = scmp.ne.s32.totalorder %s111, %s114
      %p120 = scmp.eq.s32.totalorder %s26, 0
      %p121 = por %p119, %p120
      %p122 = scmp.ne.s32.totalorder %s111, %s114
      %p123 = scmp.eq.s32.totalorder %s31, 7
      %p124 = por %p122, %p123
      %p125 = scmp.ne.s32.totalorder %s114, %s115
      %p126 = scmp.eq.s32.totalorder %s31, 0
      %p127 = por %p125, %p126
      %p128 = scmp.ne.s32.totalorder %s114, %s115
      %p129 = scmp.eq.s32.totalorder %s32, 7
      %p130 = por %p128, %p129
      %p132 = scmp.ne.s32.totalorder %s115, %s131
      %p133 = scmp.eq.s32.totalorder %s32, 0
      %p134 = por %p132, %p133
      %s136 = sadd.s32 %s135, 1
      %p139 = scmp.eq.s32.totalorder %s26, 7
      %p140 = scmp.ne.s32.totalorder %s135, %s137
      %p141 = scmp.eq.s32.totalorder %s26, 0
      %p142 = por %p140, %p141
      %p143 = scmp.ne.s32.totalorder %s135, %s137
      %p144 = scmp.eq.s32.totalorder %s31, 7
      %p145 = por %p143, %p144
      %p146 = scmp.ne.s32.totalorder %s137, %s138
      %p147 = scmp.eq.s32.totalorder %s31, 0
      %p148 = por %p146, %p147
      %p149 = scmp.ne.s32.totalorder %s137, %s138
      %p150 = scmp.eq.s32.totalorder %s32, 7
      %p151 = por %p149, %p150
      %p153 = scmp.ne.s32.totalorder %s138, %s152
      %p154 = scmp.eq.s32.totalorder %s32, 0
      %p155 = por %p153, %p154
      %s157 = sadd.s32 %s156, 1
      %p160 = scmp.eq.s32.totalorder %s26, 7
      %p161 = scmp.ne.s32.totalorder %s156, %s158
      %p162 = scmp.eq.s32.totalorder %s26, 0
      %p163 = por %p161, %p162
      %p164 = scmp.ne.s32.totalorder %s156, %s158
      %p165 = scmp.eq.s32.totalorder %s31, 7
      %p166 = por %p164, %p165
      %p167 = scmp.ne.s32.totalorder %s158, %s159
      %p168 = scmp.eq.s32.totalorder %s31, 0
      %p169 = por %p167, %p168
      %p170 = scmp.ne.s32.totalorder %s158, %s159
      %p171 = scmp.eq.s32.totalorder %s32, 7
      %p172 = por %p170, %p171
      %p174 = scmp.ne.s32.totalorder %s159, %s173
      %p175 = scmp.eq.s32.totalorder %s32, 0
      %p176 = por %p174, %p175
      %s177 = ssub.s32 %s33, %s52
      %s178 = ssub.s32 %s34, %s48
      %s179 = sor.u32 %s177, %s178
      %p180 = scmp.eq.s32.totalorder %s179, 0
      %s182 = sadd.s32 %s181, 1
      %s183 = scalar_select %p180, %s181, %s182
      %p186 = pneg %p180
      %p187 = scmp.eq.s32.totalorder %s26, 7
      %p188 = por %p186, %p187
      %p189 = scmp.ne.s32.totalorder %s181, %s184
      %p190 = scmp.eq.s32.totalorder %s26, 0
      %p191 = por %p189, %p190
      %p192 = scmp.ne.s32.totalorder %s181, %s184
      %p193 = scmp.eq.s32.totalorder %s31, 7
      %p194 = por %p192, %p193
      %p195 = scmp.ne.s32.totalorder %s184, %s185
      %p196 = scmp.eq.s32.totalorder %s31, 0
      %p197 = por %p195, %p196
      %p198 = scmp.ne.s32.totalorder %s184, %s185
      %p199 = scmp.eq.s32.totalorder %s32, 7
      %p200 = por %p198, %p199
      %p202 = scmp.ne.s32.totalorder %s185, %s201
      %p203 = scmp.eq.s32.totalorder %s32, 0
      %p204 = por %p202, %p203
      %s205 = ssub.s32 %s33, %s52
      %s206 = ssub.s32 %s35, %s44
      %s207 = sor.u32 %s205, %s206
      %s208 = ssub.s32 %s34, %s48
      %s209 = sor.u32 %s207, %s208
      %p210 = scmp.eq.s32.totalorder %s209, 0
      %s212 = sadd.s32 %s211, 1
      %s213 = scalar_select %p210, %s211, %s212
      %p216 = pneg %p210
      %p217 = scmp.eq.s32.totalorder %s26, 7
      %p218 = por %p216, %p217
      %p219 = scmp.ne.s32.totalorder %s211, %s214
      %p220 = scmp.eq.s32.totalorder %s26, 0
      %p221 = por %p219, %p220
      %p222 = scmp.ne.s32.totalorder %s211, %s214
      %p223 = scmp.eq.s32.totalorder %s31, 7
      %p224 = por %p222, %p223
      %p225 = scmp.ne.s32.totalorder %s214, %s215
      %p226 = scmp.eq.s32.totalorder %s31, 0
      %p227 = por %p225, %p226
      %p228 = scmp.ne.s32.totalorder %s214, %s215
      %p229 = scmp.eq.s32.totalorder %s32, 7
      %p230 = por %p228, %p229
      %p232 = scmp.ne.s32.totalorder %s215, %s231
      %p233 = scmp.eq.s32.totalorder %s32, 0
      %p234 = por %p232, %p233
      %p235 = scmp.le.s32.totalorder 1, %s26
      %p236 = scmp.lt.s32.totalorder %s26, 9
      %p237 = pnand %p235, %p236
      %p238 = pneg %p237
      // Predicated region
      $region9: #{tpu_custom_call.1} parent=5 // pred_check
        _
      $region10: #{tpu_custom_call.1} parent=5 // pred_check_branch
        %240 = sbr.rel (%p237) target = $region12
      $region11: #{tpu_custom_call.1} parent=5 // pred_region
        %s241 = ssub.s32 %s26, 1
        // Predicated region
        $region13: #{tpu_custom_call.1} parent=11 // pred_check
          %p242 = pneg %p148
        $region14: #{tpu_custom_call.1} parent=11 // pred_check_branch
          %244 = sbr.rel (%p242) target = $region16
        $region15: #{tpu_custom_call.1} parent=11 // pred_region
          %246 = vsyncadd [#allocation10], 0
          %s247 = sshll.u32 %s3, 4
          %s248 = int_to_ptr.hbm [resolvable:$true] %s247
          %s249 = sshll.u32 [#allocation9], 4
          %s250 = int_to_ptr.vmem [resolvable:$true] %s249
          %255 = dma.hbm_to_vmem [thread:$0]  %s248, 256, %s250, [#allocation10], 64, 64, 4
        $region16: #{tpu_custom_call.1} parent=11 // pred_fallthru
          _
        // Predicated region
        $region17: #{tpu_custom_call.1} parent=11 // pred_check
          %p256 = pneg %p169
        $region18: #{tpu_custom_call.1} parent=11 // pred_check_branch
          %258 = sbr.rel (%p256) target = $region20
        $region19: #{tpu_custom_call.1} parent=11 // pred_region
          _
        $region20: #{tpu_custom_call.1} parent=11 // pred_fallthru
          _
      $region12: #{tpu_custom_call.1} parent=5 // pred_fallthru
        _
      %p259 = scmp.lt.s32.totalorder %s26, 8
      // Predicated region
      $region21: #{tpu_custom_call.1} parent=5 // pred_check
        %p260 = pneg %p259
      $region22: #{tpu_custom_call.1} parent=5 // pred_check_branch
        %262 = sbr.rel (%p260) target = $region24
      $region23: #{tpu_custom_call.1} parent=5 // pred_region
        // Predicated region
        $region25: #{tpu_custom_call.1} parent=23 // pred_check
          %p263 = pneg %p69
        $region26: #{tpu_custom_call.1} parent=23 // pred_check_branch
          %265 = sbr.rel (%p263) target = $region28
        $region27: #{tpu_custom_call.1} parent=23 // pred_region
          %s266 = sand.u32 %s59, 1
          %s267 = scalar_lea.sflag [#allocation4], %s266
          %s268 = sand.u32 %s59, 1
          %s269 = smul.addr %s268, 4
          %s270 = scalar_lea.vmem [#allocation3], %s269
          %272 = vsyncadd %s267, 0
          %s273 = sadd.s32 %s34, %s35
          %s274 = smul.addr %s33, 4
          %s275 = sadd.s32 %s273, %s274
          %s276 = smul.addr %s275, 4
          %s277 = scalar_lea.hbm %s0, %s276
          %s279 = sshll.u32 %s277, 4
          %s280 = int_to_ptr.hbm [resolvable:$true] %s279
          %s281 = sshll.u32 %s270, 4
          %s282 = int_to_ptr.vmem [resolvable:$true] %s281
          %284 = dma.hbm_to_vmem [thread:$0]  %s280, 64, %s282, %s267
        $region28: #{tpu_custom_call.1} parent=23 // pred_fallthru
          _
        // Predicated region
        $region29: #{tpu_custom_call.1} parent=23 // pred_check
          %p285 = pneg %p95
        $region30: #{tpu_custom_call.1} parent=23 // pred_check_branch
          %287 = sbr.rel (%p285) target = $region32
        $region31: #{tpu_custom_call.1} parent=23 // pred_region
          %s288 = sand.u32 %s26, 1
          %s289 = scalar_lea.sflag [#allocation7], %s288
          %s290 = sand.u32 %s85, 1
          %s291 = smul.addr %s290, 16
          %s292 = scalar_lea.vmem [#allocation6], %s291
          %294 = vsyncadd %s289, 0
          %s295 = smul.addr %s33, 4
          %s296 = smul.addr %s295, 4
          %s297 = scalar_lea.hbm %s1, %s296
          %s298 = sshll.u32 %s297, 4
          %s299 = int_to_ptr.hbm [resolvable:$true] %s298
          %s300 = sshll.u32 %s292, 4
          %s301 = int_to_ptr.vmem [resolvable:$true] %s300
          %306 = dma.hbm_to_vmem [thread:$0]  %s299, 256, %s301, %s289, 64, 64, 4
        $region32: #{tpu_custom_call.1} parent=23 // pred_fallthru
          _
        // Predicated region
        $region33: #{tpu_custom_call.1} parent=23 // pred_check
          %p307 = pneg %p121
        $region34: #{tpu_custom_call.1} parent=23 // pred_check_branch
          %309 = sbr.rel (%p307) target = $region36
        $region35: #{tpu_custom_call.1} parent=23 // pred_region
          %s310 = sand.u32 %s26, 1
          %s311 = scalar_lea.sflag [#allocation7], %s310
          %s312 = sand.u32 %s111, 1
          %s313 = smul.addr %s312, 16
          %s314 = scalar_lea.vmem [#allocation8], %s313
          %316 = vsyncadd %s311, 0
          %s317 = smul.addr %s33, 4
          %s318 = smul.addr %s317, 4
          %s319 = scalar_lea.hbm %s2, %s318
          %s320 = sshll.u32 %s319, 4
          %s321 = int_to_ptr.hbm [resolvable:$true] %s320
          %s322 = sshll.u32 %s314, 4
          %s323 = int_to_ptr.vmem [resolvable:$true] %s322
          %328 = dma.hbm_to_vmem [thread:$0]  %s321, 256, %s323, %s311, 64, 64, 4
        $region36: #{tpu_custom_call.1} parent=23 // pred_fallthru
          _
      $region24: #{tpu_custom_call.1} parent=5 // pred_fallthru
        _
      %p329 = scmp.le.s32.totalorder 1, %s26
      %p330 = scmp.lt.s32.totalorder %s26, 9
      %p331 = pnand %p329, %p330
      %p332 = pneg %p331
      // Predicated region
      $region37: #{tpu_custom_call.1} parent=5 // pred_check
        _
      $region38: #{tpu_custom_call.1} parent=5 // pred_check_branch
        %334 = sbr.rel (%p331) target = $region40
      $region39: #{tpu_custom_call.1} parent=5 // pred_region
        %s335 = ssub.s32 %s26, 1
        %s336 = sand.u32 %s62, 1
        %s337 = scalar_lea.sflag [#allocation4], %s336
        %s338 = sand.u32 %s62, 1
        %s339 = smul.addr %s338, 4
        %s340 = scalar_lea.vmem [#allocation3], %s339
        // Predicated region
        $region41: #{tpu_custom_call.1} parent=39 // pred_check
          %p341 = pneg %p75
        $region42: #{tpu_custom_call.1} parent=39 // pred_check_branch
          %343 = sbr.rel (%p341) target = $region44
        $region43: #{tpu_custom_call.1} parent=39 // pred_region
          %345 = dma.done %s337, 64
        $region44: #{tpu_custom_call.1} parent=39 // pred_fallthru
          _
        %s346 = sand.u32 %s31, 1
        %s347 = scalar_lea.sflag [#allocation7], %s346
        %s348 = sand.u32 %s88, 1
        %s349 = smul.addr %s348, 16
        %s350 = scalar_lea.vmem [#allocation6], %s349
        // Predicated region
        $region45: #{tpu_custom_call.1} parent=39 // pred_check
          %p351 = pneg %p101
        $region46: #{tpu_custom_call.1} parent=39 // pred_check_branch
          %353 = sbr.rel (%p351) target = $region48
        $region47: #{tpu_custom_call.1} parent=39 // pred_region
          %355 = dma.done %s347, 256
        $region48: #{tpu_custom_call.1} parent=39 // pred_fallthru
          _
        %s356 = sand.u32 %s31, 1
        %s357 = scalar_lea.sflag [#allocation7], %s356
        %s358 = sand.u32 %s114, 1
        %s359 = smul.addr %s358, 16
        %s360 = scalar_lea.vmem [#allocation8], %s359
        // Predicated region
        $region49: #{tpu_custom_call.1} parent=39 // pred_check
          %p361 = pneg %p127
        $region50: #{tpu_custom_call.1} parent=39 // pred_check_branch
          %363 = sbr.rel (%p361) target = $region52
        $region51: #{tpu_custom_call.1} parent=39 // pred_region
          %365 = dma.done %s357, 256
        $region52: #{tpu_custom_call.1} parent=39 // pred_fallthru
          _
        // Predicated region
        $region53: #{tpu_custom_call.1} parent=39 // pred_check
          %p366 = pneg %p148
        $region54: #{tpu_custom_call.1} parent=39 // pred_check_branch
          %368 = sbr.rel (%p366) target = $region56
        $region55: #{tpu_custom_call.1} parent=39 // pred_region
          %370 = dma.done [#allocation10], 256
        $region56: #{tpu_custom_call.1} parent=39 // pred_fallthru
          _
        %s371 = sand.u32 %s62, 1
        %s372 = scalar_lea.sflag [#allocation4], %s371
        %s373 = sand.u32 %s62, 1
        %s374 = smul.addr %s373, 4
        %s375 = scalar_lea.vmem [#allocation3], %s374
        %p376 = pneg %p75
        %p377 = pneg %p72
        %s378 = sand.u32 %s31, 1
        %s379 = scalar_lea.sflag [#allocation7], %s378
        %s380 = sand.u32 %s88, 1
        %s381 = smul.addr %s380, 16
        %s382 = scalar_lea.vmem [#allocation6], %s381
        %p383 = pneg %p101
        %p384 = pneg %p98
        %s385 = sand.u32 %s31, 1
        %s386 = scalar_lea.sflag [#allocation7], %s385
        %s387 = sand.u32 %s114, 1
        %s388 = smul.addr %s387, 16
        %s389 = scalar_lea.vmem [#allocation8], %s388
        %p390 = pneg %p127
        %p391 = pneg %p124
        %p392 = pneg %p148
        %p393 = pneg %p145
        %p394 = pneg %p169
        %p395 = pneg %p166
        %p396 = pneg %p197
        %p397 = pneg %p194
        %s398 = sand.u32 %s184, 1
        %s399 = scalar_lea.sflag [#allocation5], %s398
        %s400 = sand.u32 %s184, 1
        %s401 = smul.addr %s400, 8
        %s402 = scalar_lea.vmem [#allocation11], %s401
        %p403 = pneg %p227
        %p404 = pneg %p224
        %s405 = sand.u32 %s214, 1
        %s406 = scalar_lea.sflag [#allocation13], %s405
        %s407 = sand.u32 %s214, 1
        %s408 = smul.addr %s407, 4
        %s409 = scalar_lea.vmem [#allocation12], %s408
        %v411 = vld [vmem:[%s340] sm:$0xf]
        %s412 = smul.addr %s38, 4
        %s413 = scalar_lea.vmem %s350, %s412 [#allocation6]
        %v414 = vld [vmem:[%s413] sm:$0xf]
        %s415 = smul.addr %s38, 4
        %s416 = scalar_lea.vmem %s360, %s415 [#allocation8]
        %v417 = vld [vmem:[%s416] sm:$0xf]
        %vm418 = vcmask 64512
        %v420 = vsel %vm418, %v411, 0
        %v423 = vsel %vm418, %v414, 0
        %425 = vmatpush.bf16.xpose.msra.mxu0 0
        %426 = vmatpush.bf16.xpose.msra.mxu0 0
        %427 = vmatpush.bf16.xpose.msra.mxu0 0
        %428 = vmatpush.bf16.xpose.msra.mxu0 0
        %429 = vmatpush.bf16.xpose.msra.mxu0 0
        %430 = vmatpush.bf16.xpose.msra.mxu0 0
        %431 = vmatpush.bf16.xpose.msra.mxu0 0
        %432 = vmatpush.bf16.xpose.msra.mxu0 %v423
        %433 = vmatmul.bf16.gmra.mxu0 %v420
        %v434 = vpop.f32.mrf.mxu0
        %v435 = vadd.f32 0.0, %v434
        %v436 = vpop.f32.mrf.mxu0
        %437 = vdwg.mxu0
        %v438 = vsel %vm418, %v435, -inf
        %439 = vmax.xlane.f32.xlu0 %v438
        %v440 = vpop.xlane.xlu0 %439
        %v441 = vsub.f32 %v435, %v440
        %v442 = vmul.f32 %v441, 1.442695
        %v443 = vpow.pop %v442
        %v444 = vsel %vm418, %v443, 0.0
        %445 = vadd.xlane.f32.xlu0 %v444
        %v446 = vpop.xlane.xlu0 %445
        %v447 = vrcp.pop %v446
        %v448 = vmul.f32 %v446, %v447
        %v449 = vsub.f32 1.0, %v448
        %v450 = vmul.f32 %v447, %v449
        %v451 = vadd.f32 %v447, %v450
        %vm452 = vweird.f32 %v446
        %vm453 = vweird.f32 %v447
        %vm454 = vmor %vm452, %vm453
        %v455 = vsel %vm454, %v447, %v451
        %v456 = vand.u32 2147483647, %v446
        %vm457 = vcmp.eq.f32.partialorder %v456, 8.507059e+37
        %v458 = vand.u32 %v446, 2147483648
        %v459 = vor.u32 1.1754944e-38, %v458
        %v460 = vsel %vm457, %v459, %v455
        %v461 = vmul.f32 %v443, %v460
        %v462 = vpack.c.bf16 %v461, %v461
        %vm463 = vcmask 60416
        %464 = vst.msk [vmem:[%s409] sm:$0xf] %vm463, %v462
        %v466 = vsel %vm418, %v462, 0
        %vm468 = vcmask 1043456
        %v470 = vsel %vm468, %v417, 0
        %472 = vmatpush.bf16.msra.mxu0 0
        %473 = vmatpush.bf16.msra.mxu0 0
        %474 = vmatpush.bf16.msra.mxu0 0
        %475 = vmatpush.bf16.msra.mxu0 0
        %476 = vmatpush.bf16.msra.mxu0 0
        %477 = vmatpush.bf16.msra.mxu0 0
        %478 = vmatpush.bf16.msra.mxu0 0
        %479 = vmatpush.bf16.msra.mxu0 %v470
        %480 = vmatmul.bf16.gmra.mxu0 %v466
        %v481 = vpop.f32.mrf.mxu0
        %v482 = vadd.f32 0.0, %v481
        %v483 = vpop.f32.mrf.mxu0
        %484 = vdwg.mxu0
        %v485 = vpack.c.bf16 %v482, %v482
        %s486 = smul.addr %s38, 4
        %s487 = scalar_lea.vmem [#allocation9], %s486
        %v488 = vld [vmem:[%s487] sm:$0xf]
        %v490 = vsel %vm418, %v485, 0
        %v493 = vsel %vm468, %v488, 0
        %495 = vmatpush.bf16.msra.mxu0 0
        %496 = vmatpush.bf16.msra.mxu0 0
        %497 = vmatpush.bf16.msra.mxu0 0
        %498 = vmatpush.bf16.msra.mxu0 0
        %499 = vmatpush.bf16.msra.mxu0 0
        %500 = vmatpush.bf16.msra.mxu0 0
        %501 = vmatpush.bf16.msra.mxu0 0
        %502 = vmatpush.bf16.msra.mxu0 %v493
        %503 = vmatmul.bf16.gmra.mxu0 %v490
        %v504 = vpop.f32.mrf.mxu0
        %v505 = vadd.f32 0.0, %v504
        %v506 = vpop.f32.mrf.mxu0
        %507 = vdwg.mxu0
        %p508 = scmp.eq.s32.totalorder %s38, 0
        // Predicated region
        $region57: #{tpu_custom_call.1} parent=39 // pred_check
          %p509 = pneg %p508
        $region58: #{tpu_custom_call.1} parent=39 // pred_check_branch
          %511 = sbr.rel (%p509) target = $region60
        $region59: #{tpu_custom_call.1} parent=39 // pred_region
          %vm512 = vcmask 261120
          %513 = vst.msk [vmem:[#allocation2] sm:$0xff] %vm512, 0.0
        $region60: #{tpu_custom_call.1} parent=39 // pred_fallthru
          _
        %v514 = vld [vmem:[#allocation2] sm:$0xff]
        %v515 = vadd.f32 %v514, %v505
        %vm516 = vcmask 261120
        %517 = vst.msk [vmem:[#allocation2] sm:$0xff] %vm516, %v515
        %p518 = scmp.eq.s32.totalorder %s38, 3
        // Predicated region
        $region61: #{tpu_custom_call.1} parent=39 // pred_check
          %p519 = pneg %p518
        $region62: #{tpu_custom_call.1} parent=39 // pred_check_branch
          %521 = sbr.rel (%p519) target = $region64
        $region63: #{tpu_custom_call.1} parent=39 // pred_region
          %v522 = vld [vmem:[#allocation2] sm:$0xff]
          %v523 = vld [vmem:[%s4] sm:$0x1]
          %v525 = vperm.slane %v523, 0
          %v527 = vadd.f32 %v522, %v525
          %528 = vst.msk [vmem:[%s402] sm:$0xff] %vm516, %v527
        $region64: #{tpu_custom_call.1} parent=39 // pred_fallthru
          _
        %s529 = sand.u32 %s184, 1
        %s530 = scalar_lea.sflag [#allocation5], %s529
        %s531 = sand.u32 %s184, 1
        %s532 = smul.addr %s531, 8
        %s533 = scalar_lea.vmem [#allocation11], %s532
        %s534 = sand.u32 %s214, 1
        %s535 = scalar_lea.sflag [#allocation13], %s534
        %s536 = sand.u32 %s214, 1
        %s537 = smul.addr %s536, 4
        %s538 = scalar_lea.vmem [#allocation12], %s537
        // Predicated region
        $region65: #{tpu_custom_call.1} parent=39 // pred_check
          %p539 = pneg %p194
        $region66: #{tpu_custom_call.1} parent=39 // pred_check_branch
          %541 = sbr.rel (%p539) target = $region68
        $region67: #{tpu_custom_call.1} parent=39 // pred_region
          %543 = vsyncadd %s530, 0
          %s544 = sadd.s32 %s37, %s36
          %s545 = smul.addr %s544, 8
          %s546 = scalar_lea.hbm %s5, %s545
          %s548 = sshll.u32 %s533, 4
          %s549 = int_to_ptr.vmem [resolvable:$true] %s548
          %s550 = sshll.u32 %s546, 4
          %s551 = int_to_ptr.hbm [resolvable:$true] %s550
          %553 = dma.vmem_to_hbm [thread:$0]  %s549, 128, %s551, %s530
        $region68: #{tpu_custom_call.1} parent=39 // pred_fallthru
          _
        // Predicated region
        $region69: #{tpu_custom_call.1} parent=39 // pred_check
          %p554 = pneg %p224
        $region70: #{tpu_custom_call.1} parent=39 // pred_check_branch
          %556 = sbr.rel (%p554) target = $region72
        $region71: #{tpu_custom_call.1} parent=39 // pred_region
          %558 = vsyncadd %s535, 0
          %s559 = sadd.s32 %s37, %s38
          %s560 = smul.addr %s36, 4
          %s561 = sadd.s32 %s559, %s560
          %s562 = smul.addr %s561, 4
          %s563 = scalar_lea.hbm %s6, %s562
          %s565 = sshll.u32 %s538, 4
          %s566 = int_to_ptr.vmem [resolvable:$true] %s565
          %s567 = sshll.u32 %s563, 4
          %s568 = int_to_ptr.hbm [resolvable:$true] %s567
          %570 = dma.vmem_to_hbm [thread:$0]  %s566, 64, %s568, %s535
        $region72: #{tpu_custom_call.1} parent=39 // pred_fallthru
          _
      $region40: #{tpu_custom_call.1} parent=5 // pred_fallthru
        _
      %p571 = scmp.le.s32.totalorder 2, %s26
      // Predicated region
      $region73: #{tpu_custom_call.1} parent=5 // pred_check
        %p572 = pneg %p571
      $region74: #{tpu_custom_call.1} parent=5 // pred_check_branch
        %574 = sbr.rel (%p572) target = $region76
      $region75: #{tpu_custom_call.1} parent=5 // pred_region
        %s575 = ssub.s32 %s26, 2
        // Predicated region
        $region77: #{tpu_custom_call.1} parent=75 // pred_check
          %p576 = pneg %p200
        $region78: #{tpu_custom_call.1} parent=75 // pred_check_branch
          %578 = sbr.rel (%p576) target = $region80
        $region79: #{tpu_custom_call.1} parent=75 // pred_region
          %s579 = sand.u32 %s185, 1
          %s580 = scalar_lea.sflag [#allocation5], %s579
          %s581 = sand.u32 %s185, 1
          %s582 = smul.addr %s581, 8
          %s583 = scalar_lea.vmem [#allocation11], %s582
          %585 = dma.done %s580, 128
        $region80: #{tpu_custom_call.1} parent=75 // pred_fallthru
          _
        // Predicated region
        $region81: #{tpu_custom_call.1} parent=75 // pred_check
          %p586 = pneg %p230
        $region82: #{tpu_custom_call.1} parent=75 // pred_check_branch
          %588 = sbr.rel (%p586) target = $region84
        $region83: #{tpu_custom_call.1} parent=75 // pred_region
          %s589 = sand.u32 %s215, 1
          %s590 = scalar_lea.sflag [#allocation13], %s589
          %s591 = sand.u32 %s215, 1
          %s592 = smul.addr %s591, 4
          %s593 = scalar_lea.vmem [#allocation12], %s592
          %595 = dma.done %s590, 64
        $region84: #{tpu_custom_call.1} parent=75 // pred_fallthru
          _
      $region76: #{tpu_custom_call.1} parent=5 // pred_fallthru
        _
    $region6: #{tpu_custom_call.1} parent=1 // loop_footer
      %s30 = sadd.s32 1, %s26
    $region7: #{tpu_custom_call.1} parent=1 // loop_footer_branch
      %25 = sbr.rel target = $region3
    $region8: #{tpu_custom_call.1} parent=1 // loop_exit
      _
    %596 = vsyncpa [#allocation4], 1
    %s597 = scalar_lea.sflag [#allocation4], 1
    %598 = vsyncpa %s597, 1
    %599 = vsyncpa [#allocation7], 1
    %s600 = scalar_lea.sflag [#allocation7], 1
    %601 = vsyncpa %s600, 1
    %602 = vsyncpa [#allocation10], 1
    %603 = vsyncpa [#allocation5], 1
    %s604 = scalar_lea.sflag [#allocation5], 1
    %605 = vsyncpa %s604, 1
    %606 = vsyncpa [#allocation13], 1
    %s607 = scalar_lea.sflag [#allocation13], 1
    %608 = vsyncpa %s607, 1

</llo_original>
